<compile_context>
chip_gen: v7x
topology: tpu7x:2x2x1
jax: 0.10.0
libtpu: 0.0.40
codegen_flags: <defaults>
</compile_context>

<pallas_src>
import functools
import math

import jax
import jax.numpy as jnp
from jax import lax
from jax.experimental import pallas as pl
from jax.experimental.pallas import tpu as pltpu


def _nqa_kernel(v_ref, c_ref, wf_ref, bf_ref, k_ref, out_ref, score_ref,
                *, tb, q_len, k_len, k_pad):
    e = k_ref.shape[-1]

    k_f32 = k_ref[...]                                    # (TB*k_len, E) f32
    k_bf = k_f32.astype(jnp.bfloat16)                     # in-kernel cast (VPU)

    # Fused score: one flat (TB*k_len, E) x (E, q_len) bf16 MXU matmul, f32 acc.
    s_flat = jnp.dot(k_bf, v_ref[...],
                     preferred_element_type=jnp.float32) + c_ref[...]

    # Lane-preserving reshapes only (split/merge of leading dims).
    k3 = k_f32.reshape(tb, k_len, e)                      # (TB, k_len, E)
    s3 = s_flat.reshape(tb, k_len, q_len)                 # (TB, k_len, q_len)

    # Softmax over k_len (axis=1, sublane reduce); exact division so the returned
    # score rows sum to 1 (and the bias fusion below stays exact).
    s3 = s3 - jnp.max(s3, axis=1, keepdims=True)
    p = jnp.exp(s3)
    attn3 = p / jnp.sum(p, axis=1, keepdims=True)         # (TB, k_len, q_len) f32

    if q_len == 1:
        # context = attention-weighted sum of k: VPU broadcast-mul + sublane reduce.
        ctx_flat = jnp.sum(attn3 * k3, axis=1)            # (TB, E) f32
        # Relayout + zero-pad score into a lane-dense (TB, k_pad) slab using only
        # broadcast / iota / mul / sublane-reduce.  O(k_len*k_pad) per batch row,
        # cheap for the short sequences this module targets.
        eye = (lax.broadcasted_iota(jnp.int32, (k_len, k_pad), 0) ==
               lax.broadcasted_iota(jnp.int32, (k_len, k_pad), 1)
               ).astype(jnp.float32)                      # (k_len, k_pad)
        score_out = jnp.sum(attn3 * eye[None, :, :], axis=1)   # (TB, k_pad)
    else:
        # TODO(synk): q_len > 1 path is correct but uses a small batched einsum /
        # transpose; it is not tuned (module default is q_len=1).
        ctx = jnp.einsum('bkq,bke->bqe', attn3, k3,
                         preferred_element_type=jnp.float32)
        ctx_flat = ctx.reshape(tb * q_len, e)
        score_out = jnp.swapaxes(attn3, 1, 2).reshape(tb * q_len, k_len)

    # Output projection: one flat (TB*q_len, E) x (E, O_pad) bf16 MXU matmul.
    out = jnp.dot(ctx_flat.astype(jnp.bfloat16), wf_ref[...],
                  preferred_element_type=jnp.float32) + bf_ref[...]

    # dropout(p=0) is identity.
    out_ref[...] = out                                    # (TB*q_len, O_pad) lane-dense
    score_ref[...] = score_out                            # (TB*q_len, K_pad)


def _round_up(x, m):
    return ((x + m - 1) // m) * m


def _pick_tb(batch, q_len, k_len, step_bytes_fn, budget, max_tb=None):
    """Largest batch tile that divides B, keeps block sublane dims 8-aligned and
    fits the per-step VMEM budget; prefers >= 2 grid steps (v7x has 2 TensorCores)."""
    divisors = [d for d in range(batch, 0, -1) if batch % d == 0]
    aligned = [d for d in divisors
               if d == batch or ((d * q_len) % 8 == 0 and (d * k_len) % 8 == 0)]
    cands = [d for d in aligned
             if step_bytes_fn(d) <= budget and (max_tb is None or d <= max_tb)]
    if not cands:
        cands = aligned       # graceful fallback (odd B): single legal full block
    multi = [d for d in cands if d < batch]
    return multi[0] if multi else cands[0]


def no_query_attention(k, params, *, max_tb=None,
                       vmem_budget_bytes=24 * 1024 * 1024):
    """k: (B, k_len, E) float32.  params: dict of weights (see init_params).

    Returns (output (B, q_len, out_dim), score (B, q_len, k_len)) matching the
    PyTorch NoQueryAttention forward (dot_product, n_head=1, dropout=0).
    """
    B, k_len, E = k.shape
    q = params["q"]                      # (q_len, E)
    wk, bk = params["wk"], params["bk"]  # (H, E), (1, H)
    wq, bq = params["wq"], params["bq"]  # (H, E), (1, H)
    wp, bp = params["wp"], params["bp"]  # (O, H), (1, O)
    q_len = q.shape[0]
    O = wp.shape[0]

    # ---- Host-side fusion (tiny one-off f32 matmuls; qx is batch-invariant). ----
    qx = jnp.dot(q, wq.T) + bq                       # (q_len, H)
    v = jnp.dot(wk.T, qx.T)                          # (E, q_len)
    c = jnp.dot(bk, qx.T)                            # (1, q_len)
    w_fused = jnp.dot(wk.T, wp.T)                    # (E, O)
    b_fused = jnp.dot(bk, wp.T) + bp                 # (1, O)

    O_pad = _round_up(O, 128)
    K_pad = _round_up(k_len, 128) if q_len == 1 else k_len
    if O_pad != O:                                   # lane-dense output for free
        w_fused = jnp.pad(w_fused, ((0, 0), (0, O_pad - O)))
        b_fused = jnp.pad(b_fused, ((0, 0), (0, O_pad - O)))

    v_bf = v.astype(jnp.bfloat16)
    c_f = c.astype(jnp.float32)
    wf_bf = w_fused.astype(jnp.bfloat16)
    bf_f = b_fused.astype(jnp.float32)
    k_flat = k.reshape(B * k_len, E).astype(jnp.float32)   # f32; bf16 cast in-kernel

    # ---- Batch-tile selection from a VMEM byte budget. ----
    def step_bytes(tb):
        kin = tb * k_len * E * 4 * 2                       # f32 k block, double-buffered
        outs = tb * q_len * (O_pad + K_pad) * 4 * 2        # out + score blocks
        inter = tb * k_len * E * (2 + 4)                   # bf16 k copy + attn*k product
        inter += tb * k_len * (K_pad + 4 * q_len) * 4      # score relayout + s/p/attn
        inter += tb * q_len * (E * 6 + O_pad * 4)          # ctx f32+bf16, out f32
        return kin + outs + inter

    TB = _pick_tb(B, q_len, k_len, step_bytes, vmem_budget_bytes, max_tb)
    grid = (B // TB,)

    def inv(arr):
        n = arr.ndim
        return pl.BlockSpec(arr.shape, lambda i: (0,) * n)   # grid-invariant resident

    out_shapes = (
        jax.ShapeDtypeStruct((B * q_len, O_pad), jnp.float32),
        jax.ShapeDtypeStruct((B * q_len, K_pad), jnp.float32),
    )

    out_flat, score_flat = pl.pallas_call(
        functools.partial(_nqa_kernel, tb=TB, q_len=q_len, k_len=k_len, k_pad=K_pad),
        out_shape=out_shapes,
        grid_spec=pltpu.PrefetchScalarGridSpec(
            num_scalar_prefetch=0,
            grid=grid,
            in_specs=[
                inv(v_bf),                                        # v   (E, q_len)  bf16
                inv(c_f),                                         # c   (1, q_len)  f32
                inv(wf_bf),                                       # Wf  (E, O_pad)  bf16
                inv(bf_f),                                        # bf  (1, O_pad)  f32
                pl.BlockSpec((TB * k_len, E), lambda i: (i, 0)),  # k batch-block   f32
            ],
            out_specs=[
                pl.BlockSpec((TB * q_len, O_pad), lambda i: (i, 0)),
                pl.BlockSpec((TB * q_len, K_pad), lambda i: (i, 0)),
            ],
        ),
        compiler_params=pltpu.CompilerParams(
            dimension_semantics=("parallel",),
            # Raise v5e's 16 MiB default scoped VMEM; stays under v7x's 64 MiB physical.
            vmem_limit_bytes=48 * 1024 * 1024,
        ),
    )(v_bf, c_f, wf_bf, bf_f, k_flat)

    if O_pad != O:
        out_flat = out_flat[:, :O]
    if K_pad != k_len:
        score_flat = score_flat[:, :k_len]
    return out_flat.reshape(B, q_len, O), score_flat.reshape(B, q_len, k_len)


def init_params(key, embed_dim, hidden_dim, out_dim, q_len=1):
    """Deterministic init mirroring PyTorch defaults (uniform +/- 1/sqrt(fan_in))."""
    ks = jax.random.split(key, 7)

    def u(kk, shape, bound):
        return jax.random.uniform(kk, shape, jnp.float32, -bound, bound)

    b_lin = 1.0 / math.sqrt(embed_dim)       # fan_in of w_k / w_q
    b_proj = 1.0 / math.sqrt(hidden_dim)     # fan_in of proj (n_head * hidden)
    b_q = 1.0 / math.sqrt(embed_dim)         # NoQueryAttention.reset_q
    return {
        "wk": u(ks[0], (hidden_dim, embed_dim), b_lin),
        "bk": u(ks[1], (1, hidden_dim), b_lin),
        "wq": u(ks[2], (hidden_dim, embed_dim), b_lin),
        "bq": u(ks[3], (1, hidden_dim), b_lin),
        "wp": u(ks[4], (out_dim, hidden_dim), b_proj),
        "bp": u(ks[5], (1, out_dim), b_proj),
        "q":  u(ks[6], (q_len, embed_dim), b_q),
    }


def _reference(k, params):
    """Pure-JAX f32 reference of the PyTorch forward (n_head=1, dot_product)."""
    q = params["q"][None, :, :].repeat(k.shape[0], axis=0)            # (B, q_len, E)
    kx = jnp.einsum("ble,he->blh", k, params["wk"]) + params["bk"]    # (B, k_len, H)
    qx = jnp.einsum("ble,he->blh", q, params["wq"]) + params["bq"]    # (B, q_len, H)
    score = jnp.einsum("bqh,bkh->bqk", qx, kx)
    score = jax.nn.softmax(score, axis=-1)
    out = jnp.einsum("bqk,bkh->bqh", score, kx)
    out = jnp.einsum("bqh,oh->bqo", out, params["wp"]) + params["bp"]
    return out, score


if __name__ == "__main__":
    B, k_len, E = 2, 8, 32
    H, O, q_len = E, E, 1   # defaults: hidden=embed//n_head, out_dim=embed, q_len=1

    key = jax.random.PRNGKey(0)
    pkey, dkey = jax.random.split(key)
    params = init_params(pkey, E, H, O, q_len)
    k = jax.random.normal(dkey, (B, k_len, E), jnp.float32)

    out, score = no_query_attention(k, params)
    out, score = jax.block_until_ready(out), jax.block_until_ready(score)

    ref_out, ref_score = _reference(k, params)
    assert out.shape == (B, q_len, O) and score.shape == (B, q_len, k_len)
    # bf16 MXU operands / fused bf16 weights -> compare against f32 reference loosely.
    assert jnp.allclose(out, ref_out, atol=2e-2, rtol=2e-2)
    assert jnp.allclose(score, ref_score, atol=2e-2, rtol=2e-2)

    # Exercise the multi-block (grid > 1) batch-tiled path as well.
    B2 = 32
    k2 = jax.random.normal(jax.random.PRNGKey(1), (B2, k_len, E), jnp.float32)
    out2, score2 = no_query_attention(k2, params, max_tb=8)   # grid = (4,)
    out2, score2 = jax.block_until_ready(out2), jax.block_until_ready(score2)
    ref_out2, ref_score2 = _reference(k2, params)
    assert out2.shape == (B2, q_len, O) and score2.shape == (B2, q_len, k_len)
    assert jnp.allclose(out2, ref_out2, atol=2e-2, rtol=2e-2)
    assert jnp.allclose(score2, ref_score2, atol=2e-2, rtol=2e-2)

    # TODO(synk): dropout with p>0 (training-mode RNG mask), n_head>1 and the
    # mlp/bi_linear/scaled_dot_product score functions are not implemented; this
    # covers the NoQueryAttention defaults (dot_product, n_head=1, dropout=0).
    print("KERNEL_OK")
</pallas_src>

<mosaic_0001>
module attributes {stable_mosaic.version = 11 : i64} {
  func.func @_nqa_kernel(%arg0: i32, %arg1: memref<32x1xbf16, #tpu.memory_space<vmem>>, %arg2: memref<1x1xf32, #tpu.memory_space<vmem>>, %arg3: memref<32x128xbf16, #tpu.memory_space<vmem>>, %arg4: memref<1x128xf32, #tpu.memory_space<vmem>>, %arg5: memref<16x32xf32, #tpu.memory_space<vmem>>, %arg6: memref<2x128xf32, #tpu.memory_space<vmem>>, %arg7: memref<2x128xf32, #tpu.memory_space<vmem>>) attributes {dimension_semantics = [#tpu.dimension_semantics<parallel>], iteration_bounds = array<i64: 1>, scalar_prefetch = 0 : i64, scratch_operands = 0 : i64, tpu.core_type = #tpu.core_type<tc>, window_params = [{pipeline_mode = #tpu.pipeline_mode<synchronous>, transform_indices = @transform_0, window_bounds = array<i64: 32, 1>}, {pipeline_mode = #tpu.pipeline_mode<synchronous>, transform_indices = @transform_1, window_bounds = array<i64: 1, 1>}, {pipeline_mode = #tpu.pipeline_mode<synchronous>, transform_indices = @transform_2, window_bounds = array<i64: 32, 128>}, {pipeline_mode = #tpu.pipeline_mode<synchronous>, transform_indices = @transform_3, window_bounds = array<i64: 1, 128>}, {transform_indices = @transform_4, window_bounds = array<i64: 16, 32>}, {transform_indices = @transform_5, window_bounds = array<i64: 2, 128>}, {transform_indices = @transform_6, window_bounds = array<i64: 2, 128>}]} {
    %c0 = arith.constant 0 : index
    %c0_0 = arith.constant 0 : index
    %0 = vector.load %arg5[%c0, %c0_0] : memref<16x32xf32, #tpu.memory_space<vmem>>, vector<16x32xf32>
    %1 = arith.truncf %0 : vector<16x32xf32> to vector<16x32xbf16>
    %c0_1 = arith.constant 0 : index
    %c0_2 = arith.constant 0 : index
    %2 = vector.load %arg1[%c0_1, %c0_2] : memref<32x1xbf16, #tpu.memory_space<vmem>>, vector<32x1xbf16>
    %cst = arith.constant dense<0.000000e+00> : vector<16x1xf32>
    %3 = tpu.matmul %1, %2, %cst {dimension_numbers = #tpu.dot_dimension_numbers<[1], [0], [0], [1], [0, 0, 1, 1], [], []>} : vector<16x32xbf16>, vector<32x1xbf16>, vector<16x1xf32> -> vector<16x1xf32>
    %c0_3 = arith.constant 0 : index
    %c0_4 = arith.constant 0 : index
    %4 = vector.load %arg2[%c0_3, %c0_4] : memref<1x1xf32, #tpu.memory_space<vmem>>, vector<1x1xf32>
    %5 = vector.broadcast %4 : vector<1x1xf32> to vector<16x1xf32>
    %6 = arith.addf %3, %5 : vector<16x1xf32>
    %7 = vector.shape_cast %0 : vector<16x32xf32> to vector<2x8x32xf32>
    %8 = vector.shape_cast %6 : vector<16x1xf32> to vector<2x8x1xf32>
    %cst_5 = arith.constant dense<0xFF800000> : vector<2x1xf32>
    %9 = vector.multi_reduction <maximumf>, %8, %cst_5 [1] : vector<2x8x1xf32> to vector<2x1xf32>
    %10 = vector.shape_cast %9 : vector<2x1xf32> to vector<2x1x1xf32>
    %11 = vector.broadcast %10 : vector<2x1x1xf32> to vector<2x8x1xf32>
    %12 = arith.subf %8, %11 : vector<2x8x1xf32>
    %13 = math.exp %12 : vector<2x8x1xf32>
    %cst_6 = arith.constant dense<0.000000e+00> : vector<2x1xf32>
    %14 = vector.multi_reduction <add>, %13, %cst_6 [1] : vector<2x8x1xf32> to vector<2x1xf32>
    %15 = vector.shape_cast %14 : vector<2x1xf32> to vector<2x1x1xf32>
    %16 = vector.broadcast %15 : vector<2x1x1xf32> to vector<2x8x1xf32>
    %17 = arith.divf %13, %16 : vector<2x8x1xf32>
    %18 = vector.broadcast %17 : vector<2x8x1xf32> to vector<2x8x32xf32>
    %19 = arith.mulf %18, %7 : vector<2x8x32xf32>
    %cst_7 = arith.constant dense<0.000000e+00> : vector<2x32xf32>
    %20 = vector.multi_reduction <add>, %19, %cst_7 [1] : vector<2x8x32xf32> to vector<2x32xf32>
    %21 = tpu.iota {dimensions = array<i32: 0>} : vector<8x128xi32>
    %22 = tpu.iota {dimensions = array<i32: 1>} : vector<8x128xi32>
    %23 = arith.cmpi eq, %21, %22 : vector<8x128xi32>
    %24 = arith.extui %23 : vector<8x128xi1> to vector<8x128xi32>
    %25 = arith.sitofp %24 : vector<8x128xi32> to vector<8x128xf32>
    %26 = vector.shape_cast %25 : vector<8x128xf32> to vector<1x8x128xf32>
    %27 = vector.broadcast %17 : vector<2x8x1xf32> to vector<2x8x128xf32>
    %28 = vector.broadcast %26 : vector<1x8x128xf32> to vector<2x8x128xf32>
    %29 = arith.mulf %27, %28 : vector<2x8x128xf32>
    %cst_8 = arith.constant dense<0.000000e+00> : vector<2x128xf32>
    %30 = vector.multi_reduction <add>, %29, %cst_8 [1] : vector<2x8x128xf32> to vector<2x128xf32>
    %31 = arith.truncf %20 : vector<2x32xf32> to vector<2x32xbf16>
    %c0_9 = arith.constant 0 : index
    %c0_10 = arith.constant 0 : index
    %32 = vector.load %arg3[%c0_9, %c0_10] : memref<32x128xbf16, #tpu.memory_space<vmem>>, vector<32x128xbf16>
    %cst_11 = arith.constant dense<0.000000e+00> : vector<2x128xf32>
    %33 = tpu.matmul %31, %32, %cst_11 {dimension_numbers = #tpu.dot_dimension_numbers<[1], [0], [0], [1], [0, 0, 1, 1], [], []>} : vector<2x32xbf16>, vector<32x128xbf16>, vector<2x128xf32> -> vector<2x128xf32>
    %c0_12 = arith.constant 0 : index
    %c0_13 = arith.constant 0 : index
    %34 = vector.load %arg4[%c0_12, %c0_13] : memref<1x128xf32, #tpu.memory_space<vmem>>, vector<1x128xf32>
    %35 = vector.broadcast %34 : vector<1x128xf32> to vector<2x128xf32>
    %36 = arith.addf %33, %35 : vector<2x128xf32>
    %c0_14 = arith.constant 0 : index
    %c0_15 = arith.constant 0 : index
    %37 = vector.load %arg6[%c0_14, %c0_15] : memref<2x128xf32, #tpu.memory_space<vmem>>, vector<2x128xf32>
    tpu.vector_store %arg6[%c0_14, %c0_15], %36 {strides = array<i32>} : memref<2x128xf32, #tpu.memory_space<vmem>>, vector<2x128xf32>,
    %c0_16 = arith.constant 0 : index
    %c0_17 = arith.constant 0 : index
    %38 = vector.load %arg7[%c0_16, %c0_17] : memref<2x128xf32, #tpu.memory_space<vmem>>, vector<2x128xf32>
    tpu.vector_store %arg7[%c0_16, %c0_17], %30 {strides = array<i32>} : memref<2x128xf32, #tpu.memory_space<vmem>>, vector<2x128xf32>,
    return
  }
  func.func @transform_0(%arg0: i32) -> (i32, i32) {
    %c0_i32 = arith.constant 0 : i32
    %c0_i32_0 = arith.constant 0 : i32
    %c0_i32_1 = arith.constant 0 : i32
    return %c0_i32, %c0_i32_0 : i32, i32
  }
  func.func @transform_1(%arg0: i32) -> (i32, i32) {
    %c0_i32 = arith.constant 0 : i32
    %c0_i32_0 = arith.constant 0 : i32
    %c0_i32_1 = arith.constant 0 : i32
    return %c0_i32, %c0_i32_0 : i32, i32
  }
  func.func @transform_2(%arg0: i32) -> (i32, i32) {
    %c0_i32 = arith.constant 0 : i32
    %c0_i32_0 = arith.constant 0 : i32
    %c0_i32_1 = arith.constant 0 : i32
    return %c0_i32, %c0_i32_0 : i32, i32
  }
  func.func @transform_3(%arg0: i32) -> (i32, i32) {
    %c0_i32 = arith.constant 0 : i32
    %c0_i32_0 = arith.constant 0 : i32
    %c0_i32_1 = arith.constant 0 : i32
    return %c0_i32, %c0_i32_0 : i32, i32
  }
  func.func @transform_4(%arg0: i32) -> (i32, i32) {
    %c0_i32 = arith.constant 0 : i32
    %c0_i32_0 = arith.constant 0 : i32
    return %arg0, %c0_i32 : i32, i32
  }
  func.func @transform_5(%arg0: i32) -> (i32, i32) {
    %c0_i32 = arith.constant 0 : i32
    %c0_i32_0 = arith.constant 0 : i32
    return %arg0, %c0_i32 : i32, i32
  }
  func.func @transform_6(%arg0: i32) -> (i32, i32) {
    %c0_i32 = arith.constant 0 : i32
    %c0_i32_0 = arith.constant 0 : i32
    return %arg0, %c0_i32 : i32, i32
  }
}

</mosaic_0001>

<llo_original>
// kernel: tpu_custom_call.1
$region0: #{tpu_custom_call.1}
  #allocation0 [shape = 'u32[]', space=smem, size = 0x4, offset = 0x4, fixed_abs, tag = 'smem constant byte address 0x4 - core index']
  #allocation1 [shape = 'u32[144,128]{1,0:T(1,128)}', space=vmem, size = 0x12000, scoped, tag = 'internal scratch']
  #allocation2 [shape = 'f32[1,1]{1,0:T(1,128)S(1)}', space=vmem, size = 0x200, scoped, tag = 'scoped memory for tpu_custom_call.1']
  %s0 = inlined_call_operand.vmem [shape: bf16[32,1], index: 0, kind: input, shape index: {}]
  %s1 = inlined_call_operand.<no memory space> [shape: f32[1,1], index: 1, kind: input, shape index: {}]
  %s2 = inlined_call_operand.vmem [shape: bf16[32,128], index: 2, kind: input, shape index: {}]
  %s3 = inlined_call_operand.hbm [shape: f32[1,128], index: 3, kind: input, shape index: {}]
  %s4 = inlined_call_operand.vmem [shape: f32[16,32], index: 4, kind: input, shape index: {}]
  %s5 = inlined_call_operand.hbm [shape: f32[2,128], index: 5, kind: output, shape index: {0}]
  %s6 = inlined_call_operand.hbm [shape: f32[2,128], index: 6, kind: output, shape index: {1}]
  %7 = xla_tuple %s5, %s6
  %s8 = sld [smem:[#allocation0]]
  $region42: #{tpu_custom_call.1} parent=0
    _
  %s10 = ssub.s32 1, %s8
  %s11 = scalar_select 0, %s10, %s8
  %v12 = vstv %s1
  %13 = vst [vmem:[#allocation2] sm:$0x1] %v12
  $region1: #{tpu_custom_call.1} parent=0
    #allocation3 [shape = 'u8[512]{0}', space=vmem, size = 0x400, scoped, tag = 'input window, operand 3, single buffered']
    #allocation4 [shape = 's32[1]{0}', space=sflag, size = 0x4, scoped, tag = 'scoped memory for tpu_custom_call.1']
    #allocation5 [shape = 's32[1]{0}', space=sflag, size = 0x4, scoped, tag = 'scoped memory for tpu_custom_call.1']
    #allocation6 [shape = 'u8[1024]{0}', space=vmem, size = 0x400, scoped, tag = 'output window, operand 0, single buffered']
    #allocation7 [shape = 'u8[1024]{0}', space=vmem, size = 0x400, scoped, tag = 'output window, operand 1, single buffered']
    #allocation8 [shape = 's32[1]{0}', space=sflag, size = 0x4, scoped, tag = 'scoped memory for tpu_custom_call.1']
    %14 = vsyncpa [#allocation4], 0
    %15 = vsyncpa [#allocation5], 0
    %16 = vsyncpa [#allocation8], 0
    // Predicated region
    $region2: #{tpu_custom_call.1} parent=1 // pred_check
      _
    $region3: #{tpu_custom_call.1} parent=1 // pred_check_branch
      %18 = sbr.rel (0) target = $region5
    $region4: #{tpu_custom_call.1} parent=1 // pred_region
      _
    $region5: #{tpu_custom_call.1} parent=1 // pred_fallthru
      _
    // Predicated region
    $region6: #{tpu_custom_call.1} parent=1 // pred_check
      _
    $region7: #{tpu_custom_call.1} parent=1 // pred_check_branch
      %20 = sbr.rel (0) target = $region9
    $region8: #{tpu_custom_call.1} parent=1 // pred_region
      _
    $region9: #{tpu_custom_call.1} parent=1 // pred_fallthru
      _
    // Predicated region
    $region10: #{tpu_custom_call.1} parent=1 // pred_check
      _
    $region11: #{tpu_custom_call.1} parent=1 // pred_check_branch
      %22 = sbr.rel (0) target = $region13
    $region12: #{tpu_custom_call.1} parent=1 // pred_region
      _
    $region13: #{tpu_custom_call.1} parent=1 // pred_fallthru
      _
    // Predicated region
    $region14: #{tpu_custom_call.1} parent=1 // pred_check
      _
    $region15: #{tpu_custom_call.1} parent=1 // pred_check_branch
      %24 = sbr.rel (0) target = $region17
    $region16: #{tpu_custom_call.1} parent=1 // pred_region
      %s26 = ssub.s32 16, 16
      %27 = vsyncadd [#allocation4], %s26
      %s29 = sshll.u32 [#allocation3], 4
      %s30 = int_to_ptr.vmem [resolvable:$true] %s29
      %32 = dma.hbm_to_vmem [thread:$0]  %s3, 16, %s30, [#allocation4]
    $region17: #{tpu_custom_call.1} parent=1 // pred_fallthru
      _
    // Predicated region
    $region18: #{tpu_custom_call.1} parent=1 // pred_check
      _
    $region19: #{tpu_custom_call.1} parent=1 // pred_check_branch
      %34 = sbr.rel (0) target = $region21
    $region20: #{tpu_custom_call.1} parent=1 // pred_region
      _
    $region21: #{tpu_custom_call.1} parent=1 // pred_fallthru
      _
    // Predicated region
    $region22: #{tpu_custom_call.1} parent=1 // pred_check
      _
    $region23: #{tpu_custom_call.1} parent=1 // pred_check_branch
      %36 = sbr.rel (0) target = $region25
    $region24: #{tpu_custom_call.1} parent=1 // pred_region
      %37 = dma.done [#allocation4], 16
    $region25: #{tpu_custom_call.1} parent=1 // pred_fallthru
      _
    %v39 = vld [vmem:[%s4] sm:$0xff]
    %v40 = vld [vmem:[%s4 + $0x8] sm:$0xff]
    %v41 = vpack.c.bf16 %v40, %v39
    %v42 = vld [vmem:[%s0] sm:$0xf]
    %v43 = vld [vmem:[%s0 + $0x4] sm:$0xf]
    %v44 = vld [vmem:[%s0 + $0x8] sm:$0xf]
    %v45 = vld [vmem:[%s0 + $0xc] sm:$0xf]
    %v46 = vld [vmem:[#allocation2] sm:$0x1]
    %v48 = vlaneseq
    %v49 = vshrl.u32 %v48, 7
    %v50 = vsub.s32 0, %v49
    %v51 = vrot.slane %v46, %v50
    %v57 = vunpack.c.l.b16 %v42
    %v58 = vunpack.c.l.b16 %v43
    %v59 = vunpack.c.l.b16 %v44
    %v60 = vunpack.c.l.b16 %v45
    %v61 = vpack.c.b16 %v58, %v57
    %v62 = vpack.c.b16 %v60, %v59
    %vm65 = vcmask 261120
    %v67 = vsel %vm65, %v41, 0
    %69 = vmatprep.subr.bf16.mxu0 0
    %70 = vmatpush1.bf16.msra.mxu0 %v61
    %71 = vmatprep.subr.bf16.mxu0 0
    %72 = vmatpush1.bf16.msra.mxu0 %v62
    %73 = vmatprep.subr.bf16.mxu0 0
    %74 = vmatpush1.bf16.msra.mxu0 0
    %75 = vmatprep.subr.bf16.mxu0 0
    %76 = vmatpush1.bf16.msra.mxu0 0
    %77 = vmatprep.subr.bf16.mxu0 0
    %78 = vmatpush1.bf16.msra.mxu0 0
    %79 = vmatprep.subr.bf16.mxu0 0
    %80 = vmatpush1.bf16.msra.mxu0 0
    %81 = vmatprep.subr.bf16.mxu0 0
    %82 = vmatpush1.bf16.msra.mxu0 0
    %83 = vmatprep.subr.bf16.mxu0 0
    %84 = vmatpush1.bf16.msra.mxu0 0
    %85 = vmatprep.subr.bf16.mxu0 0
    %86 = vmatpush1.bf16.msra.mxu0 0
    %87 = vmatprep.subr.bf16.mxu0 0
    %88 = vmatpush1.bf16.msra.mxu0 0
    %89 = vmatprep.subr.bf16.mxu0 0
    %90 = vmatpush1.bf16.msra.mxu0 0
    %91 = vmatprep.subr.bf16.mxu0 0
    %92 = vmatpush1.bf16.msra.mxu0 0
    %93 = vmatprep.subr.bf16.mxu0 0
    %94 = vmatpush1.bf16.msra.mxu0 0
    %95 = vmatprep.subr.bf16.mxu0 0
    %96 = vmatpush1.bf16.msra.mxu0 0
    %97 = vmatprep.subr.bf16.mxu0 0
    %98 = vmatpush1.bf16.msra.mxu0 0
    %99 = vmatprep.subr.bf16.mxu0 0
    %100 = vmatpush1.bf16.msra.mxu0 0
    %101 = vmatprep.mubr.bf16.mxu0 0
    %102 = vmatmul.mubr.bf16.gmra.mrb[0].mxu0 %v67
    %v103 = vpop.f32.mrb[0].mxu0
    %v104 = vadd.f32 %v51, %v103
    %v105 = vpop.f32.mrb[0].mxu0
    %v106 = vpop.f32.mrb[0].mxu0
    %v107 = vadd.f32 %v51, %v106
    %v108 = vpop.f32.mrb[0].mxu0
    %109 = vdwg.mxu0
    %vm110 = vcmask 7168
    %v111 = vsel %vm110, %v104, -inf
    %v112 = vrot.slane %v111, 4
    %v113 = vmax.f32 %v111, %v112
    %v114 = vrot.slane %v113, 2
    %v115 = vmax.f32 %v113, %v114
    %v116 = vrot.slane %v115, 1
    %v117 = vmax.f32 %v115, %v116
    %v118 = vsel %vm110, %v107, -inf
    %v119 = vrot.slane %v118, 4
    %v120 = vmax.f32 %v118, %v119
    %v121 = vrot.slane %v120, 2
    %v122 = vmax.f32 %v120, %v121
    %v123 = vrot.slane %v122, 1
    %v124 = vmax.f32 %v122, %v123
    %v125 = vsub.f32 %v104, %v117
    %v126 = vsub.f32 %v107, %v124
    %v127 = vmul.f32 %v125, 1.442695
    %v128 = vpow.pop %v127
    %v129 = vmul.f32 %v126, 1.442695
    %v130 = vpow.pop %v129
    %v131 = vsel %vm110, %v128, 0.0
    %v132 = vrot.slane %v131, 4
    %v133 = vadd.f32 %v131, %v132
    %v134 = vrot.slane %v133, 2
    %v135 = vadd.f32 %v133, %v134
    %v136 = vrot.slane %v135, 1
    %v137 = vadd.f32 %v135, %v136
    %v138 = vsel %vm110, %v130, 0.0
    %v139 = vrot.slane %v138, 4
    %v140 = vadd.f32 %v138, %v139
    %v141 = vrot.slane %v140, 2
    %v142 = vadd.f32 %v140, %v141
    %v143 = vrot.slane %v142, 1
    %v144 = vadd.f32 %v142, %v143
    %v145 = vrcp.pop %v137
    %v146 = vmul.f32 %v128, %v145
    %v147 = vrcp.pop %v144
    %v148 = vmul.f32 %v130, %v147
    %150 = vset.pattern.permute.xlu0 0
    %151 = vperm.xlu0 %150, %v146
    %v152 = vpop.permute.xlu0 %151
    %155 = vset.pattern.permute.xlu0 0
    %156 = vperm.xlu0 %155, %v148
    %v157 = vpop.permute.xlu0 %156
    %v159 = vmul.f32 %v152, %v39
    %v160 = vmul.f32 %v157, %v40
    %v161 = vsel %vm65, %v159, 0.0
    %v162 = vrot.slane %v161, 4
    %v163 = vadd.f32 %v161, %v162
    %v164 = vrot.slane %v163, 2
    %v165 = vadd.f32 %v163, %v164
    %v166 = vrot.slane %v165, 1
    %v167 = vadd.f32 %v165, %v166
    %v168 = vsel %vm65, %v160, 0.0
    %v169 = vrot.slane %v168, 4
    %v170 = vadd.f32 %v168, %v169
    %v171 = vrot.slane %v170, 2
    %v172 = vadd.f32 %v170, %v171
    %v173 = vrot.slane %v172, 1
    %v174 = vadd.f32 %v172, %v173
    %v175 = vlaneseq
    %v176 = vshrl.u32 %v175, 7
    %v177 = vlaneseq
    %v178 = vand.u32 %v177, 127
    %vm179 = vcmp.eq.s32.totalorder %v176, %v178
    %v180 = vsel %vm179, 1, 0
    %v181 = vcvt.s32.f32 %v180
    %v182 = vmul.f32 %v152, %v181
    %v183 = vmul.f32 %v157, %v181
    %v184 = vrot.slane %v182, 4
    %v185 = vadd.f32 %v182, %v184
    %v186 = vrot.slane %v185, 2
    %v187 = vadd.f32 %v185, %v186
    %v188 = vrot.slane %v187, 1
    %v189 = vadd.f32 %v187, %v188
    %v190 = vrot.slane %v183, 4
    %v191 = vadd.f32 %v183, %v190
    %v192 = vrot.slane %v191, 2
    %v193 = vadd.f32 %v191, %v192
    %v194 = vrot.slane %v193, 1
    %v195 = vadd.f32 %v193, %v194
    %v196 = vpack.c.bf16 %v167, %v167
    %v197 = vpack.c.bf16 %v174, %v174
    %v198 = vld [vmem:[%s2] sm:$0xf]
    %v199 = vld [vmem:[%s2 + $0x4] sm:$0xf]
    %v200 = vld [vmem:[%s2 + $0x8] sm:$0xf]
    %v201 = vld [vmem:[%s2 + $0xc] sm:$0xf]
    %v202 = vld [vmem:[#allocation3] sm:$0x1]
    %v204 = vlaneseq
    %v205 = vshrl.u32 %v204, 7
    %v206 = vsub.s32 0, %v205
    %v207 = vrot.slane %v202, %v206
    %v211 = vunpack.c.l.b16 %v196
    %v212 = vunpack.c.l.b16 %v197
    %vm213 = vcmask 1041409
    %v214 = vsel %vm213, %v212, %v211
    %v215 = vpack.c.b16 %v214, %v214
    %v220 = vunpack.c.l.b16 %v198
    %v221 = vunpack.c.l.b16 %v199
    %v222 = vunpack.c.l.b16 %v200
    %v223 = vunpack.c.l.b16 %v201
    %v224 = vpack.c.b16 %v221, %v220
    %v225 = vpack.c.b16 %v223, %v222
    %v229 = vsel %vm65, %v215, 0
    %231 = vmatprep.subr.bf16.mxu0 0
    %232 = vmatpush1.bf16.msra.mxu0 %v224
    %233 = vmatprep.subr.bf16.mxu0 0
    %234 = vmatpush1.bf16.msra.mxu0 %v225
    %235 = vmatprep.subr.bf16.mxu0 0
    %236 = vmatpush1.bf16.msra.mxu0 0
    %237 = vmatprep.subr.bf16.mxu0 0
    %238 = vmatpush1.bf16.msra.mxu0 0
    %239 = vmatprep.subr.bf16.mxu0 0
    %240 = vmatpush1.bf16.msra.mxu0 0
    %241 = vmatprep.subr.bf16.mxu0 0
    %242 = vmatpush1.bf16.msra.mxu0 0
    %243 = vmatprep.subr.bf16.mxu0 0
    %244 = vmatpush1.bf16.msra.mxu0 0
    %245 = vmatprep.subr.bf16.mxu0 0
    %246 = vmatpush1.bf16.msra.mxu0 0
    %247 = vmatprep.subr.bf16.mxu0 0
    %248 = vmatpush1.bf16.msra.mxu0 0
    %249 = vmatprep.subr.bf16.mxu0 0
    %250 = vmatpush1.bf16.msra.mxu0 0
    %251 = vmatprep.subr.bf16.mxu0 0
    %252 = vmatpush1.bf16.msra.mxu0 0
    %253 = vmatprep.subr.bf16.mxu0 0
    %254 = vmatpush1.bf16.msra.mxu0 0
    %255 = vmatprep.subr.bf16.mxu0 0
    %256 = vmatpush1.bf16.msra.mxu0 0
    %257 = vmatprep.subr.bf16.mxu0 0
    %258 = vmatpush1.bf16.msra.mxu0 0
    %259 = vmatprep.subr.bf16.mxu0 0
    %260 = vmatpush1.bf16.msra.mxu0 0
    %261 = vmatprep.subr.bf16.mxu0 0
    %262 = vmatpush1.bf16.msra.mxu0 0
    %263 = vmatprep.mubr.bf16.mxu0 0
    %264 = vmatmul.mubr.bf16.gmra.mrb[0].mxu0 %v229
    %v265 = vpop.f32.mrb[0].mxu0
    %v266 = vadd.f32 %v207, %v265
    %v267 = vpop.f32.mrb[0].mxu0
    %v268 = vpop.f32.mrb[0].mxu0
    %v269 = vpop.f32.mrb[0].mxu0
    %270 = vdwg.mxu0
    %271 = vst [vmem:[#allocation6] sm:$0x3] %v266
    %v274 = vsel %vm213, %v195, %v189
    %276 = vst [vmem:[#allocation7] sm:$0x3] %v274
    // Predicated region
    $region26: #{tpu_custom_call.1} parent=1 // pred_check
      _
    $region27: #{tpu_custom_call.1} parent=1 // pred_check_branch
      %278 = sbr.rel (0) target = $region29
    $region28: #{tpu_custom_call.1} parent=1 // pred_region
      %s280 = ssub.s32 32, 32
      %281 = vsyncadd [#allocation5], %s280
      %s283 = sshll.u32 [#allocation6], 4
      %s284 = int_to_ptr.vmem [resolvable:$true] %s283
      %286 = dma.vmem_to_hbm [thread:$0]  %s284, 32, %s5, [#allocation5]
    $region29: #{tpu_custom_call.1} parent=1 // pred_fallthru
      _
    // Predicated region
    $region30: #{tpu_custom_call.1} parent=1 // pred_check
      _
    $region31: #{tpu_custom_call.1} parent=1 // pred_check_branch
      %288 = sbr.rel (0) target = $region33
    $region32: #{tpu_custom_call.1} parent=1 // pred_region
      %s290 = ssub.s32 32, 32
      %291 = vsyncadd [#allocation8], %s290
      %s293 = sshll.u32 [#allocation7], 4
      %s294 = int_to_ptr.vmem [resolvable:$true] %s293
      %296 = dma.vmem_to_hbm [thread:$0]  %s294, 32, %s6, [#allocation8]
    $region33: #{tpu_custom_call.1} parent=1 // pred_fallthru
      _
    // Predicated region
    $region34: #{tpu_custom_call.1} parent=1 // pred_check
      _
    $region35: #{tpu_custom_call.1} parent=1 // pred_check_branch
      %298 = sbr.rel (0) target = $region37
    $region36: #{tpu_custom_call.1} parent=1 // pred_region
      %299 = dma.done [#allocation5], 32
    $region37: #{tpu_custom_call.1} parent=1 // pred_fallthru
      _
    // Predicated region
    $region38: #{tpu_custom_call.1} parent=1 // pred_check
      _
    $region39: #{tpu_custom_call.1} parent=1 // pred_check_branch
      %301 = sbr.rel (0) target = $region41
    $region40: #{tpu_custom_call.1} parent=1 // pred_region
      %302 = dma.done [#allocation8], 32
    $region41: #{tpu_custom_call.1} parent=1 // pred_fallthru
      _
    %303 = vsyncpa [#allocation4], 1
    %304 = vsyncpa [#allocation5], 1
    %305 = vsyncpa [#allocation8], 1

</llo_original>
